<compile_context>
chip_gen: v7x
topology: tpu7x:2x2x1
jax: 0.10.0
libtpu: 0.0.40
codegen_flags: <defaults>
</compile_context>

<pallas_src>
import functools

import jax
import jax.numpy as jnp
from jax.experimental import pallas as pl
from jax.experimental.pallas import tpu as pltpu

CIN, COUT, K = 6, 16, 5
H = W = 14
OH, OW = H - K + 1, W - K + 1          # 10, 10
PH, PW = OH // 2, OW // 2              # 5, 5
CW = CIN * W                           # 84   contraction dim per row-shift
NC = 2 * PW * COUT                     # 160  conv matmul cols: (dx, px, co)
PC = PW * COUT                         # 80   pooled cols: (px, co)


def _round_up(v, m):
    return ((v + m - 1) // m) * m


def _c2_kernel(x_ref, wt_ref, b_ref, o_ref, *, batch):
    # x_ref : (H*B, CIN*W)   rows = h*B + b, cols = ci*W + w
    # wt_ref: (K, CIN*W, NC) Toeplitz weights, cols = dx*PW*COUT + px*COUT + co
    # b_ref : (1, PC)        bias replicated over px
    # o_ref : (PH, B, PC)    pooled output, (py, b, px*COUT + co)
    B = batch
    x = x_ref[...]

    # Conv as 5 row-shifted matmuls (implicit im2col); acc rows = oy*B + b.
    acc = jnp.dot(x[0:OH * B, :], wt_ref[0],
                  preferred_element_type=jnp.float32)
    for kh in range(1, K):
        acc = acc + jnp.dot(x[kh * B:(kh + OH) * B, :], wt_ref[kh],
                            preferred_element_type=jnp.float32)

    # Max-pool over dx: cols [0:PC] are dx=0, cols [PC:2*PC] are dx=1 (VPU max).
    m = jnp.maximum(acc[:, :PC], acc[:, PC:])

    # Max-pool over dy (pairs of B-row slabs) + bias + ReLU, one slab per
    # pooled row.  (maxpool commutes with the per-channel bias add + ReLU.)
    bias = b_ref[...]
    for py in range(PH):
        top = m[(2 * py) * B:(2 * py + 1) * B, :]
        bot = m[(2 * py + 1) * B:(2 * py + 2) * B, :]
        o_ref[py] = jnp.maximum(jnp.maximum(top, bot) + bias, 0.0)


def _toeplitz_weights(weight):
    """weight (COUT, CIN, K, K) -> WT (K, CIN*W, 2*PW*COUT).

    WT[kh, ci*W + w, dx*PW*COUT + px*COUT + co] = weight[co, ci, kh, w - (2px+dx)]
    (zero when w - ox is outside [0, K)).  Built once in the wrapper; it is the
    only "expansion" of the conv and lives resident in VMEM (~270 KB).
    """
    sel = (jnp.arange(W)[:, None, None]
           == jnp.arange(K)[None, :, None] + jnp.arange(OW)[None, None, :])
    sel = sel.astype(weight.dtype)                       # (W, K, OW)
    wt = jnp.einsum('ochk,wkx->hcwxo', weight, sel)      # (K, CIN, W, OW, COUT)
    wt = wt.reshape(K, CIN, W, PW, 2, COUT)              # ox = 2*px + dx
    wt = wt.transpose(0, 1, 2, 4, 3, 5)                  # (kh, ci, w, dx, px, co)
    return wt.reshape(K, CW, NC)


def c2_forward(x, weight, bias, *, block_n=64):
    """x: (N, 6, 14, 14) f32; weight: (16, 6, 5, 5); bias: (16,) -> (N, 16, 5, 5)."""
    N = x.shape[0]
    x = x.astype(jnp.float32)

    # Images per grid step.  For large N keep B=64 (sweepable); for v7x prefer
    # an even number of grid steps so both TensorCores get work.
    B = min(block_n, _round_up(max(N, 1), 8))
    G = pl.cdiv(N, B)
    npad = G * B
    if npad != N:
        x = jnp.pad(x, ((0, npad - N), (0, 0), (0, 0), (0, 0)))

    # (G, H*B, CIN*W): pure layout transform, same byte count as the raw input
    # (no im2col blow-up in HBM).
    xr = x.reshape(G, B, CIN, H, W).transpose(0, 3, 1, 2, 4).reshape(G, H * B, CW)
    wt = _toeplitz_weights(weight.astype(jnp.float32))               # (5, 84, 160)
    brow = jnp.tile(bias.astype(jnp.float32), (PW,)).reshape(1, PC)  # (1, 80)

    out = pl.pallas_call(
        functools.partial(_c2_kernel, batch=B),
        out_shape=jax.ShapeDtypeStruct((G, PH, B, PC), jnp.float32),
        grid_spec=pltpu.PrefetchScalarGridSpec(
            num_scalar_prefetch=0,
            grid=(G,),
            in_specs=[
                pl.BlockSpec((None, H * B, CW), lambda g: (g, 0, 0)),
                pl.BlockSpec((K, CW, NC), lambda g: (0, 0, 0)),   # resident
                pl.BlockSpec((1, PC), lambda g: (0, 0)),          # resident
            ],
            out_specs=pl.BlockSpec((None, PH, B, PC), lambda g: (g, 0, 0, 0)),
        ),
        compiler_params=pltpu.CompilerParams(
            dimension_semantics=("parallel",)),
    )(xr, wt, brow)

    # (G, PH, B, PW*COUT) -> NCHW (N, COUT, PH, PW); cheap on 1.6 KB/image.
    out = out.reshape(G, PH, B, PW, COUT).transpose(0, 2, 4, 1, 3)
    return out.reshape(npad, COUT, PH, PW)[:N]


def _reference(x, weight, bias):
    y = jax.lax.conv_general_dilated(
        x, weight, window_strides=(1, 1), padding="VALID",
        dimension_numbers=("NCHW", "OIHW", "NCHW"),
        precision=jax.lax.Precision.HIGHEST)
    y = y + bias.reshape(1, COUT, 1, 1)
    y = jnp.maximum(y, 0.0)
    y = jax.lax.reduce_window(y, -jnp.inf, jax.lax.max,
                              (1, 1, 2, 2), (1, 1, 2, 2), "VALID")
    return y


if __name__ == "__main__":
    key = jax.random.PRNGKey(0)
    kx, kw, kb = jax.random.split(key, 3)

    N = 2
    x = jax.random.normal(kx, (N, CIN, H, W), dtype=jnp.float32)
    # Deterministic synthetic parameters (Conv2d(6, 16, kernel_size=5) shapes).
    weight = jax.random.normal(kw, (COUT, CIN, K, K), dtype=jnp.float32) / jnp.sqrt(CIN * K * K)
    bias = 0.1 * jax.random.normal(kb, (COUT,), dtype=jnp.float32)

    out = jax.block_until_ready(c2_forward(x, weight, bias))
    ref = _reference(x, weight, bias)

    assert out.shape == (N, COUT, PH, PW), out.shape
    max_err = float(jnp.abs(out - ref).max())
    assert jnp.allclose(out, ref, atol=2e-3, rtol=2e-3), max_err

    print("KERNEL_OK")
</pallas_src>

<mosaic_0001>
module attributes {stable_mosaic.version = 11 : i64} {
  func.func @_c2_kernel(%arg0: i32, %arg1: memref<1x112x84xf32, #tpu.memory_space<vmem>>, %arg2: memref<5x84x160xf32, #tpu.memory_space<vmem>>, %arg3: memref<1x80xf32, #tpu.memory_space<vmem>>, %arg4: memref<1x5x8x80xf32, #tpu.memory_space<vmem>>) attributes {dimension_semantics = [#tpu.dimension_semantics<parallel>], iteration_bounds = array<i64: 1>, scalar_prefetch = 0 : i64, scratch_operands = 0 : i64, tpu.core_type = #tpu.core_type<tc>, window_params = [{transform_indices = @transform_0, window_bounds = array<i64: 1, 112, 84>}, {pipeline_mode = #tpu.pipeline_mode<synchronous>, transform_indices = @transform_1, window_bounds = array<i64: 5, 84, 160>}, {pipeline_mode = #tpu.pipeline_mode<synchronous>, transform_indices = @transform_2, window_bounds = array<i64: 1, 80>}, {transform_indices = @transform_3, window_bounds = array<i64: 1, 5, 8, 80>}]} {
    %c0 = arith.constant 0 : index
    %c0_0 = arith.constant 0 : index
    %c0_1 = arith.constant 0 : index
    %0 = vector.load %arg1[%c0, %c0_0, %c0_1] : memref<1x112x84xf32, #tpu.memory_space<vmem>>, vector<1x112x84xf32>
    %1 = vector.shape_cast %0 : vector<1x112x84xf32> to vector<112x84xf32>
    %2 = vector.extract_strided_slice %1 {offsets = [0, 0], sizes = [80, 84], strides = [1, 1]} : vector<112x84xf32> to vector<80x84xf32>
    %c0_2 = arith.constant 0 : index
    %c0_3 = arith.constant 0 : index
    %c0_4 = arith.constant 0 : index
    %3 = vector.load %arg2[%c0_2, %c0_3, %c0_4] : memref<5x84x160xf32, #tpu.memory_space<vmem>>, vector<1x84x160xf32>
    %4 = vector.shape_cast %3 : vector<1x84x160xf32> to vector<84x160xf32>
    %cst = arith.constant dense<0.000000e+00> : vector<80x160xf32>
    %5 = tpu.matmul %2, %4, %cst {dimension_numbers = #tpu.dot_dimension_numbers<[1], [0], [0], [1], [0, 0, 1, 1], [], []>} : vector<80x84xf32>, vector<84x160xf32>, vector<80x160xf32> -> vector<80x160xf32>
    %6 = vector.extract_strided_slice %1 {offsets = [8, 0], sizes = [80, 84], strides = [1, 1]} : vector<112x84xf32> to vector<80x84xf32>
    %c1 = arith.constant 1 : index
    %c0_5 = arith.constant 0 : index
    %c0_6 = arith.constant 0 : index
    %7 = vector.load %arg2[%c1, %c0_5, %c0_6] : memref<5x84x160xf32, #tpu.memory_space<vmem>>, vector<1x84x160xf32>
    %8 = vector.shape_cast %7 : vector<1x84x160xf32> to vector<84x160xf32>
    %cst_7 = arith.constant dense<0.000000e+00> : vector<80x160xf32>
    %9 = tpu.matmul %6, %8, %cst_7 {dimension_numbers = #tpu.dot_dimension_numbers<[1], [0], [0], [1], [0, 0, 1, 1], [], []>} : vector<80x84xf32>, vector<84x160xf32>, vector<80x160xf32> -> vector<80x160xf32>
    %10 = arith.addf %5, %9 : vector<80x160xf32>
    %11 = vector.extract_strided_slice %1 {offsets = [16, 0], sizes = [80, 84], strides = [1, 1]} : vector<112x84xf32> to vector<80x84xf32>
    %c2 = arith.constant 2 : index
    %c0_8 = arith.constant 0 : index
    %c0_9 = arith.constant 0 : index
    %12 = vector.load %arg2[%c2, %c0_8, %c0_9] : memref<5x84x160xf32, #tpu.memory_space<vmem>>, vector<1x84x160xf32>
    %13 = vector.shape_cast %12 : vector<1x84x160xf32> to vector<84x160xf32>
    %cst_10 = arith.constant dense<0.000000e+00> : vector<80x160xf32>
    %14 = tpu.matmul %11, %13, %cst_10 {dimension_numbers = #tpu.dot_dimension_numbers<[1], [0], [0], [1], [0, 0, 1, 1], [], []>} : vector<80x84xf32>, vector<84x160xf32>, vector<80x160xf32> -> vector<80x160xf32>
    %15 = arith.addf %10, %14 : vector<80x160xf32>
    %16 = vector.extract_strided_slice %1 {offsets = [24, 0], sizes = [80, 84], strides = [1, 1]} : vector<112x84xf32> to vector<80x84xf32>
    %c3 = arith.constant 3 : index
    %c0_11 = arith.constant 0 : index
    %c0_12 = arith.constant 0 : index
    %17 = vector.load %arg2[%c3, %c0_11, %c0_12] : memref<5x84x160xf32, #tpu.memory_space<vmem>>, vector<1x84x160xf32>
    %18 = vector.shape_cast %17 : vector<1x84x160xf32> to vector<84x160xf32>
    %cst_13 = arith.constant dense<0.000000e+00> : vector<80x160xf32>
    %19 = tpu.matmul %16, %18, %cst_13 {dimension_numbers = #tpu.dot_dimension_numbers<[1], [0], [0], [1], [0, 0, 1, 1], [], []>} : vector<80x84xf32>, vector<84x160xf32>, vector<80x160xf32> -> vector<80x160xf32>
    %20 = arith.addf %15, %19 : vector<80x160xf32>
    %21 = vector.extract_strided_slice %1 {offsets = [32, 0], sizes = [80, 84], strides = [1, 1]} : vector<112x84xf32> to vector<80x84xf32>
    %c4 = arith.constant 4 : index
    %c0_14 = arith.constant 0 : index
    %c0_15 = arith.constant 0 : index
    %22 = vector.load %arg2[%c4, %c0_14, %c0_15] : memref<5x84x160xf32, #tpu.memory_space<vmem>>, vector<1x84x160xf32>
    %23 = vector.shape_cast %22 : vector<1x84x160xf32> to vector<84x160xf32>
    %cst_16 = arith.constant dense<0.000000e+00> : vector<80x160xf32>
    %24 = tpu.matmul %21, %23, %cst_16 {dimension_numbers = #tpu.dot_dimension_numbers<[1], [0], [0], [1], [0, 0, 1, 1], [], []>} : vector<80x84xf32>, vector<84x160xf32>, vector<80x160xf32> -> vector<80x160xf32>
    %25 = arith.addf %20, %24 : vector<80x160xf32>
    %26 = vector.extract_strided_slice %25 {offsets = [0, 0], sizes = [80, 80], strides = [1, 1]} : vector<80x160xf32> to vector<80x80xf32>
    %27 = vector.extract_strided_slice %25 {offsets = [0, 80], sizes = [80, 80], strides = [1, 1]} : vector<80x160xf32> to vector<80x80xf32>
    %28 = arith.maximumf %26, %27 : vector<80x80xf32>
    %c0_17 = arith.constant 0 : index
    %c0_18 = arith.constant 0 : index
    %29 = vector.load %arg3[%c0_17, %c0_18] : memref<1x80xf32, #tpu.memory_space<vmem>>, vector<1x80xf32>
    %30 = vector.extract_strided_slice %28 {offsets = [0, 0], sizes = [8, 80], strides = [1, 1]} : vector<80x80xf32> to vector<8x80xf32>
    %31 = vector.extract_strided_slice %28 {offsets = [8, 0], sizes = [8, 80], strides = [1, 1]} : vector<80x80xf32> to vector<8x80xf32>
    %32 = arith.maximumf %30, %31 : vector<8x80xf32>
    %33 = vector.broadcast %29 : vector<1x80xf32> to vector<8x80xf32>
    %34 = arith.addf %32, %33 : vector<8x80xf32>
    %cst_19 = arith.constant 0.000000e+00 : f32
    %35 = vector.broadcast %cst_19 : f32 to vector<8x80xf32>
    %36 = arith.maximumf %34, %35 : vector<8x80xf32>
    %c0_20 = arith.constant 0 : index
    %c0_21 = arith.constant 0 : index
    %c0_22 = arith.constant 0 : index
    %c0_23 = arith.constant 0 : index
    %37 = vector.load %arg4[%c0_20, %c0_21, %c0_22, %c0_23] : memref<1x5x8x80xf32, #tpu.memory_space<vmem>>, vector<1x1x8x80xf32>
    %38 = vector.shape_cast %37 : vector<1x1x8x80xf32> to vector<8x80xf32>
    %39 = vector.shape_cast %36 : vector<8x80xf32> to vector<1x1x8x80xf32>
    tpu.vector_store %arg4[%c0_20, %c0_21, %c0_22, %c0_23], %39 {strides = array<i32>} : memref<1x5x8x80xf32, #tpu.memory_space<vmem>>, vector<1x1x8x80xf32>,
    %40 = vector.extract_strided_slice %28 {offsets = [16, 0], sizes = [8, 80], strides = [1, 1]} : vector<80x80xf32> to vector<8x80xf32>
    %41 = vector.extract_strided_slice %28 {offsets = [24, 0], sizes = [8, 80], strides = [1, 1]} : vector<80x80xf32> to vector<8x80xf32>
    %42 = arith.maximumf %40, %41 : vector<8x80xf32>
    %43 = vector.broadcast %29 : vector<1x80xf32> to vector<8x80xf32>
    %44 = arith.addf %42, %43 : vector<8x80xf32>
    %cst_24 = arith.constant 0.000000e+00 : f32
    %45 = vector.broadcast %cst_24 : f32 to vector<8x80xf32>
    %46 = arith.maximumf %44, %45 : vector<8x80xf32>
    %c0_25 = arith.constant 0 : index
    %c1_26 = arith.constant 1 : index
    %c0_27 = arith.constant 0 : index
    %c0_28 = arith.constant 0 : index
    %47 = vector.load %arg4[%c0_25, %c1_26, %c0_27, %c0_28] : memref<1x5x8x80xf32, #tpu.memory_space<vmem>>, vector<1x1x8x80xf32>
    %48 = vector.shape_cast %47 : vector<1x1x8x80xf32> to vector<8x80xf32>
    %49 = vector.shape_cast %46 : vector<8x80xf32> to vector<1x1x8x80xf32>
    tpu.vector_store %arg4[%c0_25, %c1_26, %c0_27, %c0_28], %49 {strides = array<i32>} : memref<1x5x8x80xf32, #tpu.memory_space<vmem>>, vector<1x1x8x80xf32>,
    %50 = vector.extract_strided_slice %28 {offsets = [32, 0], sizes = [8, 80], strides = [1, 1]} : vector<80x80xf32> to vector<8x80xf32>
    %51 = vector.extract_strided_slice %28 {offsets = [40, 0], sizes = [8, 80], strides = [1, 1]} : vector<80x80xf32> to vector<8x80xf32>
    %52 = arith.maximumf %50, %51 : vector<8x80xf32>
    %53 = vector.broadcast %29 : vector<1x80xf32> to vector<8x80xf32>
    %54 = arith.addf %52, %53 : vector<8x80xf32>
    %cst_29 = arith.constant 0.000000e+00 : f32
    %55 = vector.broadcast %cst_29 : f32 to vector<8x80xf32>
    %56 = arith.maximumf %54, %55 : vector<8x80xf32>
    %c0_30 = arith.constant 0 : index
    %c2_31 = arith.constant 2 : index
    %c0_32 = arith.constant 0 : index
    %c0_33 = arith.constant 0 : index
    %57 = vector.load %arg4[%c0_30, %c2_31, %c0_32, %c0_33] : memref<1x5x8x80xf32, #tpu.memory_space<vmem>>, vector<1x1x8x80xf32>
    %58 = vector.shape_cast %57 : vector<1x1x8x80xf32> to vector<8x80xf32>
    %59 = vector.shape_cast %56 : vector<8x80xf32> to vector<1x1x8x80xf32>
    tpu.vector_store %arg4[%c0_30, %c2_31, %c0_32, %c0_33], %59 {strides = array<i32>} : memref<1x5x8x80xf32, #tpu.memory_space<vmem>>, vector<1x1x8x80xf32>,
    %60 = vector.extract_strided_slice %28 {offsets = [48, 0], sizes = [8, 80], strides = [1, 1]} : vector<80x80xf32> to vector<8x80xf32>
    %61 = vector.extract_strided_slice %28 {offsets = [56, 0], sizes = [8, 80], strides = [1, 1]} : vector<80x80xf32> to vector<8x80xf32>
    %62 = arith.maximumf %60, %61 : vector<8x80xf32>
    %63 = vector.broadcast %29 : vector<1x80xf32> to vector<8x80xf32>
    %64 = arith.addf %62, %63 : vector<8x80xf32>
    %cst_34 = arith.constant 0.000000e+00 : f32
    %65 = vector.broadcast %cst_34 : f32 to vector<8x80xf32>
    %66 = arith.maximumf %64, %65 : vector<8x80xf32>
    %c0_35 = arith.constant 0 : index
    %c3_36 = arith.constant 3 : index
    %c0_37 = arith.constant 0 : index
    %c0_38 = arith.constant 0 : index
    %67 = vector.load %arg4[%c0_35, %c3_36, %c0_37, %c0_38] : memref<1x5x8x80xf32, #tpu.memory_space<vmem>>, vector<1x1x8x80xf32>
    %68 = vector.shape_cast %67 : vector<1x1x8x80xf32> to vector<8x80xf32>
    %69 = vector.shape_cast %66 : vector<8x80xf32> to vector<1x1x8x80xf32>
    tpu.vector_store %arg4[%c0_35, %c3_36, %c0_37, %c0_38], %69 {strides = array<i32>} : memref<1x5x8x80xf32, #tpu.memory_space<vmem>>, vector<1x1x8x80xf32>,
    %70 = vector.extract_strided_slice %28 {offsets = [64, 0], sizes = [8, 80], strides = [1, 1]} : vector<80x80xf32> to vector<8x80xf32>
    %71 = vector.extract_strided_slice %28 {offsets = [72, 0], sizes = [8, 80], strides = [1, 1]} : vector<80x80xf32> to vector<8x80xf32>
    %72 = arith.maximumf %70, %71 : vector<8x80xf32>
    %73 = vector.broadcast %29 : vector<1x80xf32> to vector<8x80xf32>
    %74 = arith.addf %72, %73 : vector<8x80xf32>
    %cst_39 = arith.constant 0.000000e+00 : f32
    %75 = vector.broadcast %cst_39 : f32 to vector<8x80xf32>
    %76 = arith.maximumf %74, %75 : vector<8x80xf32>
    %c0_40 = arith.constant 0 : index
    %c4_41 = arith.constant 4 : index
    %c0_42 = arith.constant 0 : index
    %c0_43 = arith.constant 0 : index
    %77 = vector.load %arg4[%c0_40, %c4_41, %c0_42, %c0_43] : memref<1x5x8x80xf32, #tpu.memory_space<vmem>>, vector<1x1x8x80xf32>
    %78 = vector.shape_cast %77 : vector<1x1x8x80xf32> to vector<8x80xf32>
    %79 = vector.shape_cast %76 : vector<8x80xf32> to vector<1x1x8x80xf32>
    tpu.vector_store %arg4[%c0_40, %c4_41, %c0_42, %c0_43], %79 {strides = array<i32>} : memref<1x5x8x80xf32, #tpu.memory_space<vmem>>, vector<1x1x8x80xf32>,
    return
  }
  func.func @transform_0(%arg0: i32) -> (i32, i32, i32) {
    %c0_i32 = arith.constant 0 : i32
    %c0_i32_0 = arith.constant 0 : i32
    %c0_i32_1 = arith.constant 0 : i32
    return %arg0, %c0_i32, %c0_i32_0 : i32, i32, i32
  }
  func.func @transform_1(%arg0: i32) -> (i32, i32, i32) {
    %c0_i32 = arith.constant 0 : i32
    %c0_i32_0 = arith.constant 0 : i32
    %c0_i32_1 = arith.constant 0 : i32
    %c0_i32_2 = arith.constant 0 : i32
    return %c0_i32, %c0_i32_0, %c0_i32_1 : i32, i32, i32
  }
  func.func @transform_2(%arg0: i32) -> (i32, i32) {
    %c0_i32 = arith.constant 0 : i32
    %c0_i32_0 = arith.constant 0 : i32
    %c0_i32_1 = arith.constant 0 : i32
    return %c0_i32, %c0_i32_0 : i32, i32
  }
  func.func @transform_3(%arg0: i32) -> (i32, i32, i32, i32) {
    %c0_i32 = arith.constant 0 : i32
    %c0_i32_0 = arith.constant 0 : i32
    %c0_i32_1 = arith.constant 0 : i32
    %c0_i32_2 = arith.constant 0 : i32
    return %arg0, %c0_i32, %c0_i32_0, %c0_i32_1 : i32, i32, i32, i32
  }
}

</mosaic_0001>

<llo_original>
// kernel: tpu_custom_call.1
$region0: #{tpu_custom_call.1}
  #allocation0 [shape = 'u32[]', space=smem, size = 0x4, offset = 0x4, fixed_abs, tag = 'smem constant byte address 0x4 - core index']
  #allocation1 [shape = 'u32[144,128]{1,0:T(1,128)}', space=vmem, size = 0x12000, scoped, tag = 'internal scratch']
  %s0 = inlined_call_operand.vmem [shape: f32[1,112,84], index: 0, kind: input, shape index: {}]
  %s1 = inlined_call_operand.vmem [shape: f32[5,84,160], index: 1, kind: input, shape index: {}]
  %s2 = inlined_call_operand.vmem [shape: f32[1,80], index: 2, kind: input, shape index: {}]
  %s3 = inlined_call_operand.hbm [shape: f32[1,5,8,80], index: 3, kind: output, shape index: {}]
  %s4 = sld [smem:[#allocation0]]
  $region22: #{tpu_custom_call.1} parent=0
    _
  %s6 = ssub.s32 1, %s4
  %s7 = scalar_select 0, %s6, %s4
  $region1: #{tpu_custom_call.1} parent=0
    #allocation2 [shape = 'u8[20480]{0}', space=vmem, size = 0x5000, scoped, tag = 'output window, operand 0, single buffered']
    #allocation3 [shape = 's32[1]{0}', space=sflag, size = 0x4, scoped, tag = 'scoped memory for tpu_custom_call.1']
    %8 = vsyncpa [#allocation3], 0
    // Predicated region
    $region2: #{tpu_custom_call.1} parent=1 // pred_check
      _
    $region3: #{tpu_custom_call.1} parent=1 // pred_check_branch
      %10 = sbr.rel (0) target = $region5
    $region4: #{tpu_custom_call.1} parent=1 // pred_region
      _
    $region5: #{tpu_custom_call.1} parent=1 // pred_fallthru
      _
    // Predicated region
    $region6: #{tpu_custom_call.1} parent=1 // pred_check
      _
    $region7: #{tpu_custom_call.1} parent=1 // pred_check_branch
      %12 = sbr.rel (0) target = $region9
    $region8: #{tpu_custom_call.1} parent=1 // pred_region
      _
    $region9: #{tpu_custom_call.1} parent=1 // pred_fallthru
      _
    // Predicated region
    $region10: #{tpu_custom_call.1} parent=1 // pred_check
      _
    $region11: #{tpu_custom_call.1} parent=1 // pred_check_branch
      %14 = sbr.rel (0) target = $region13
    $region12: #{tpu_custom_call.1} parent=1 // pred_region
      _
    $region13: #{tpu_custom_call.1} parent=1 // pred_fallthru
      _
    %v15 = vld [vmem:[%s0] sm:$0xff]
    %v16 = vld [vmem:[%s0 + $0x8] sm:$0xff]
    %v17 = vld [vmem:[%s0 + $0x10] sm:$0xff]
    %v18 = vld [vmem:[%s0 + $0x18] sm:$0xff]
    %v19 = vld [vmem:[%s0 + $0x20] sm:$0xff]
    %v20 = vld [vmem:[%s0 + $0x28] sm:$0xff]
    %v21 = vld [vmem:[%s0 + $0x30] sm:$0xff]
    %v22 = vld [vmem:[%s0 + $0x38] sm:$0xff]
    %v23 = vld [vmem:[%s0 + $0x40] sm:$0xff]
    %v24 = vld [vmem:[%s0 + $0x48] sm:$0xff]
    %v25 = vld [vmem:[%s0 + $0x50] sm:$0xff]
    %v26 = vld [vmem:[%s0 + $0x58] sm:$0xff]
    %v27 = vld [vmem:[%s0 + $0x60] sm:$0xff]
    %v28 = vld [vmem:[%s0 + $0x68] sm:$0xff]
    %v29 = vld [vmem:[%s1] sm:$0xff]
    %v30 = vld [vmem:[%s1 + $0x8] sm:$0xff]
    %v31 = vld [vmem:[%s1 + $0x10] sm:$0xff]
    %v32 = vld [vmem:[%s1 + $0x18] sm:$0xff]
    %v33 = vld [vmem:[%s1 + $0x20] sm:$0xff]
    %v34 = vld [vmem:[%s1 + $0x28] sm:$0xff]
    %v35 = vld [vmem:[%s1 + $0x30] sm:$0xff]
    %v36 = vld [vmem:[%s1 + $0x38] sm:$0xff]
    %v37 = vld [vmem:[%s1 + $0x40] sm:$0xff]
    %v38 = vld [vmem:[%s1 + $0x48] sm:$0xff]
    %v39 = vld [vmem:[%s1 + $0x50] sm:$0xff]
    %v40 = vld [vmem:[%s1 + $0x58] sm:$0xff]
    %v41 = vld [vmem:[%s1 + $0x60] sm:$0xff]
    %v42 = vld [vmem:[%s1 + $0x68] sm:$0xff]
    %v43 = vld [vmem:[%s1 + $0x70] sm:$0xff]
    %v44 = vld [vmem:[%s1 + $0x78] sm:$0xff]
    %v45 = vld [vmem:[%s1 + $0x80] sm:$0xff]
    %v46 = vld [vmem:[%s1 + $0x88] sm:$0xff]
    %v47 = vld [vmem:[%s1 + $0x90] sm:$0xff]
    %v48 = vld [vmem:[%s1 + $0x98] sm:$0xff]
    %v49 = vld [vmem:[%s1 + $0xa0] sm:$0xf]
    %v50 = vld [vmem:[%s1 + $0xa8] sm:$0xf]
    %s51 = scalar_lea.vmem %s1, 176
    %v52 = vld [vmem:[%s51] sm:$0xff]
    %v53 = vld [vmem:[%s51 + $0x8] sm:$0xff]
    %v54 = vld [vmem:[%s51 + $0x10] sm:$0xff]
    %v55 = vld [vmem:[%s51 + $0x18] sm:$0xff]
    %v56 = vld [vmem:[%s51 + $0x20] sm:$0xff]
    %v57 = vld [vmem:[%s51 + $0x28] sm:$0xff]
    %v58 = vld [vmem:[%s51 + $0x30] sm:$0xff]
    %v59 = vld [vmem:[%s51 + $0x38] sm:$0xff]
    %v60 = vld [vmem:[%s51 + $0x40] sm:$0xff]
    %v61 = vld [vmem:[%s51 + $0x48] sm:$0xff]
    %v62 = vld [vmem:[%s51 + $0x50] sm:$0xff]
    %v63 = vld [vmem:[%s51 + $0x58] sm:$0xff]
    %v64 = vld [vmem:[%s51 + $0x60] sm:$0xff]
    %v65 = vld [vmem:[%s51 + $0x68] sm:$0xff]
    %v66 = vld [vmem:[%s51 + $0x70] sm:$0xff]
    %v67 = vld [vmem:[%s51 + $0x78] sm:$0xff]
    %v68 = vld [vmem:[%s51 + $0x80] sm:$0xff]
    %v69 = vld [vmem:[%s51 + $0x88] sm:$0xff]
    %v70 = vld [vmem:[%s51 + $0x90] sm:$0xff]
    %v71 = vld [vmem:[%s51 + $0x98] sm:$0xff]
    %v72 = vld [vmem:[%s51 + $0xa0] sm:$0xf]
    %v73 = vld [vmem:[%s51 + $0xa8] sm:$0xf]
    %vm74 = vcmask 687104
    %v76 = vsel %vm74, %v16, 0
    %v79 = vsel %vm74, %v17, 0
    %v82 = vsel %vm74, %v18, 0
    %v85 = vsel %vm74, %v19, 0
    %v88 = vsel %vm74, %v20, 0
    %v91 = vsel %vm74, %v21, 0
    %v94 = vsel %vm74, %v22, 0
    %v97 = vsel %vm74, %v23, 0
    %v100 = vsel %vm74, %v24, 0
    %v103 = vsel %vm74, %v25, 0
    %vm105 = vcmask 1043456
    %v107 = vsel %vm105, %v72, 0
    %v110 = vsel %vm105, %v73, 0
    %112 = vmatprep.subr.mxu0 %v53
    %113 = vmatpush1.msra.mxu0 %v52
    %114 = vmatprep.subr.mxu0 %v55
    %115 = vmatpush1.msra.mxu0 %v54
    %116 = vmatprep.subr.mxu0 %v57
    %117 = vmatpush1.msra.mxu0 %v56
    %118 = vmatprep.subr.mxu0 %v59
    %119 = vmatpush1.msra.mxu0 %v58
    %120 = vmatprep.subr.mxu0 %v61
    %121 = vmatpush1.msra.mxu0 %v60
    %122 = vmatprep.subr.mxu0 %v63
    %123 = vmatpush1.msra.mxu0 %v62
    %124 = vmatprep.subr.mxu0 %v65
    %125 = vmatpush1.msra.mxu0 %v64
    %126 = vmatprep.subr.mxu0 %v67
    %127 = vmatpush1.msra.mxu0 %v66
    %128 = vmatprep.subr.mxu0 %v69
    %129 = vmatpush1.msra.mxu0 %v68
    %130 = vmatprep.subr.mxu0 %v71
    %131 = vmatpush1.msra.mxu0 %v70
    %132 = vmatprep.subr.mxu0 %v110
    %133 = vmatpush1.msra.mxu0 %v107
    %134 = vmatprep.subr.mxu0 0.0
    %135 = vmatpush1.msra.mxu0 0.0
    %136 = vmatprep.subr.mxu0 0.0
    %137 = vmatpush1.msra.mxu0 0.0
    %138 = vmatprep.subr.mxu0 0.0
    %139 = vmatpush1.msra.mxu0 0.0
    %140 = vmatprep.subr.mxu0 0.0
    %141 = vmatpush1.msra.mxu0 0.0
    %142 = vmatprep.subr.mxu0 0.0
    %143 = vmatpush1.msra.mxu0 0.0
    %144 = vmatprep.subr.mxu0 0.0
    %145 = vmatpush1.msra.mxu0 0.0
    %146 = vmatprep.subr.mxu0 0.0
    %147 = vmatpush1.msra.mxu0 0.0
    %148 = vmatprep.subr.mxu0 0.0
    %149 = vmatpush1.msra.mxu0 0.0
    %150 = vmatprep.subr.mxu0 0.0
    %151 = vmatpush1.msra.mxu0 0.0
    %152 = vmatprep.subr.mxu0 0.0
    %153 = vmatpush1.msra.mxu0 0.0
    %154 = vmatprep.subr.mxu0 0.0
    %155 = vmatpush1.msra.mxu0 0.0
    %156 = vmatprep.subr.mxu0 0.0
    %157 = vmatpush1.msra.mxu0 0.0
    %158 = vmatprep.subr.mxu0 0.0
    %159 = vmatpush1.msra.mxu0 0.0
    %160 = vmatprep.subr.mxu0 0.0
    %161 = vmatpush1.msra.mxu0 0.0
    %162 = vmatprep.subr.mxu0 0.0
    %163 = vmatpush1.msra.mxu0 0.0
    %164 = vmatprep.subr.mxu0 0.0
    %165 = vmatpush1.msra.mxu0 0.0
    %166 = vmatprep.subr.mxu0 0.0
    %167 = vmatpush1.msra.mxu0 0.0
    %168 = vmatprep.subr.mxu0 0.0
    %169 = vmatpush1.msra.mxu0 0.0
    %170 = vmatprep.subr.mxu0 0.0
    %171 = vmatpush1.msra.mxu0 0.0
    %172 = vmatprep.subr.mxu0 0.0
    %173 = vmatpush1.msra.mxu0 0.0
    %174 = vmatprep.subr.mxu0 0.0
    %175 = vmatpush1.msra.mxu0 0.0
    %176 = vmatprep.mubr.f32.mxu0 0.0
    %177 = vmatmul.mubr.f32.gmra.mrb[0].mxu0 %v76
    %v178 = vpop.f32.mrb[0].mxu0
    %v179 = vadd.f32 0.0, %v178
    %v180 = vpop.f32.mrb[0].mxu0
    %v181 = vadd.f32 0.0, %v180
    %182 = vmatprep.mubr.f32.mxu0 0.0
    %183 = vmatmul.mubr.f32.gmra.mrb[0].mxu0 %v79
    %v184 = vpop.f32.mrb[0].mxu0
    %v185 = vadd.f32 0.0, %v184
    %v186 = vpop.f32.mrb[0].mxu0
    %v187 = vadd.f32 0.0, %v186
    %188 = vmatprep.mubr.f32.mxu0 0.0
    %189 = vmatmul.mubr.f32.gmra.mrb[0].mxu0 %v82
    %v190 = vpop.f32.mrb[0].mxu0
    %v191 = vadd.f32 0.0, %v190
    %v192 = vpop.f32.mrb[0].mxu0
    %v193 = vadd.f32 0.0, %v192
    %194 = vmatprep.mubr.f32.mxu0 0.0
    %195 = vmatmul.mubr.f32.gmra.mrb[0].mxu0 %v85
    %v196 = vpop.f32.mrb[0].mxu0
    %v197 = vadd.f32 0.0, %v196
    %v198 = vpop.f32.mrb[0].mxu0
    %v199 = vadd.f32 0.0, %v198
    %200 = vmatprep.mubr.f32.mxu0 0.0
    %201 = vmatmul.mubr.f32.gmra.mrb[0].mxu0 %v88
    %v202 = vpop.f32.mrb[0].mxu0
    %v203 = vadd.f32 0.0, %v202
    %v204 = vpop.f32.mrb[0].mxu0
    %v205 = vadd.f32 0.0, %v204
    %206 = vmatprep.mubr.f32.mxu0 0.0
    %207 = vmatmul.mubr.f32.gmra.mrb[0].mxu0 %v91
    %v208 = vpop.f32.mrb[0].mxu0
    %v209 = vadd.f32 0.0, %v208
    %v210 = vpop.f32.mrb[0].mxu0
    %v211 = vadd.f32 0.0, %v210
    %212 = vmatprep.mubr.f32.mxu0 0.0
    %213 = vmatmul.mubr.f32.gmra.mrb[0].mxu0 %v94
    %v214 = vpop.f32.mrb[0].mxu0
    %v215 = vadd.f32 0.0, %v214
    %v216 = vpop.f32.mrb[0].mxu0
    %v217 = vadd.f32 0.0, %v216
    %218 = vmatprep.mubr.f32.mxu0 0.0
    %219 = vmatmul.mubr.f32.gmra.mrb[0].mxu0 %v97
    %v220 = vpop.f32.mrb[0].mxu0
    %v221 = vadd.f32 0.0, %v220
    %v222 = vpop.f32.mrb[0].mxu0
    %v223 = vadd.f32 0.0, %v222
    %224 = vmatprep.mubr.f32.mxu0 0.0
    %225 = vmatmul.mubr.f32.gmra.mrb[0].mxu0 %v100
    %v226 = vpop.f32.mrb[0].mxu0
    %v227 = vadd.f32 0.0, %v226
    %v228 = vpop.f32.mrb[0].mxu0
    %v229 = vadd.f32 0.0, %v228
    %230 = vmatprep.mubr.f32.mxu0 0.0
    %231 = vmatmul.mubr.f32.gmra.mrb[0].mxu0 %v103
    %v232 = vpop.f32.mrb[0].mxu0
    %v233 = vadd.f32 0.0, %v232
    %v234 = vpop.f32.mrb[0].mxu0
    %v235 = vadd.f32 0.0, %v234
    %236 = vdwg.mxu0
    %v238 = vsel %vm74, %v15, 0
    %v241 = vsel %vm105, %v49, 0
    %v244 = vsel %vm105, %v50, 0
    %246 = vmatprep.subr.mxu0 %v30
    %247 = vmatpush1.msra.mxu0 %v29
    %248 = vmatprep.subr.mxu0 %v32
    %249 = vmatpush1.msra.mxu0 %v31
    %250 = vmatprep.subr.mxu0 %v34
    %251 = vmatpush1.msra.mxu0 %v33
    %252 = vmatprep.subr.mxu0 %v36
    %253 = vmatpush1.msra.mxu0 %v35
    %254 = vmatprep.subr.mxu0 %v38
    %255 = vmatpush1.msra.mxu0 %v37
    %256 = vmatprep.subr.mxu0 %v40
    %257 = vmatpush1.msra.mxu0 %v39
    %258 = vmatprep.subr.mxu0 %v42
    %259 = vmatpush1.msra.mxu0 %v41
    %260 = vmatprep.subr.mxu0 %v44
    %261 = vmatpush1.msra.mxu0 %v43
    %262 = vmatprep.subr.mxu0 %v46
    %263 = vmatpush1.msra.mxu0 %v45
    %264 = vmatprep.subr.mxu0 %v48
    %265 = vmatpush1.msra.mxu0 %v47
    %266 = vmatprep.subr.mxu0 %v244
    %267 = vmatpush1.msra.mxu0 %v241
    %268 = vmatprep.subr.mxu0 0.0
    %269 = vmatpush1.msra.mxu0 0.0
    %270 = vmatprep.subr.mxu0 0.0
    %271 = vmatpush1.msra.mxu0 0.0
    %272 = vmatprep.subr.mxu0 0.0
    %273 = vmatpush1.msra.mxu0 0.0
    %274 = vmatprep.subr.mxu0 0.0
    %275 = vmatpush1.msra.mxu0 0.0
    %276 = vmatprep.subr.mxu0 0.0
    %277 = vmatpush1.msra.mxu0 0.0
    %278 = vmatprep.subr.mxu0 0.0
    %279 = vmatpush1.msra.mxu0 0.0
    %280 = vmatprep.subr.mxu0 0.0
    %281 = vmatpush1.msra.mxu0 0.0
    %282 = vmatprep.subr.mxu0 0.0
    %283 = vmatpush1.msra.mxu0 0.0
    %284 = vmatprep.subr.mxu0 0.0
    %285 = vmatpush1.msra.mxu0 0.0
    %286 = vmatprep.subr.mxu0 0.0
    %287 = vmatpush1.msra.mxu0 0.0
    %288 = vmatprep.subr.mxu0 0.0
    %289 = vmatpush1.msra.mxu0 0.0
    %290 = vmatprep.subr.mxu0 0.0
    %291 = vmatpush1.msra.mxu0 0.0
    %292 = vmatprep.subr.mxu0 0.0
    %293 = vmatpush1.msra.mxu0 0.0
    %294 = vmatprep.subr.mxu0 0.0
    %295 = vmatpush1.msra.mxu0 0.0
    %296 = vmatprep.subr.mxu0 0.0
    %297 = vmatpush1.msra.mxu0 0.0
    %298 = vmatprep.subr.mxu0 0.0
    %299 = vmatpush1.msra.mxu0 0.0
    %300 = vmatprep.subr.mxu0 0.0
    %301 = vmatpush1.msra.mxu0 0.0
    %302 = vmatprep.subr.mxu0 0.0
    %303 = vmatpush1.msra.mxu0 0.0
    %304 = vmatprep.subr.mxu0 0.0
    %305 = vmatpush1.msra.mxu0 0.0
    %306 = vmatprep.subr.mxu0 0.0
    %307 = vmatpush1.msra.mxu0 0.0
    %308 = vmatprep.subr.mxu0 0.0
    %309 = vmatpush1.msra.mxu0 0.0
    %310 = vmatprep.mubr.f32.mxu0 0.0
    %311 = vmatmul.mubr.f32.gmra.mrb[0].mxu0 %v238
    %v312 = vpop.f32.mrb[0].mxu0
    %v313 = vadd.f32 %v179, %v312
    %v314 = vpop.f32.mrb[0].mxu0
    %v315 = vadd.f32 %v181, %v314
    %316 = vmatprep.mubr.f32.mxu0 0.0
    %317 = vmatmul.mubr.f32.gmra.mrb[0].mxu0 %v76
    %v318 = vpop.f32.mrb[0].mxu0
    %v319 = vadd.f32 %v185, %v318
    %v320 = vpop.f32.mrb[0].mxu0
    %v321 = vadd.f32 %v187, %v320
    %322 = vmatprep.mubr.f32.mxu0 0.0
    %323 = vmatmul.mubr.f32.gmra.mrb[0].mxu0 %v79
    %v324 = vpop.f32.mrb[0].mxu0
    %v325 = vadd.f32 %v191, %v324
    %v326 = vpop.f32.mrb[0].mxu0
    %v327 = vadd.f32 %v193, %v326
    %328 = vmatprep.mubr.f32.mxu0 0.0
    %329 = vmatmul.mubr.f32.gmra.mrb[0].mxu0 %v82
    %v330 = vpop.f32.mrb[0].mxu0
    %v331 = vadd.f32 %v197, %v330
    %v332 = vpop.f32.mrb[0].mxu0
    %v333 = vadd.f32 %v199, %v332
    %334 = vmatprep.mubr.f32.mxu0 0.0
    %335 = vmatmul.mubr.f32.gmra.mrb[0].mxu0 %v85
    %v336 = vpop.f32.mrb[0].mxu0
    %v337 = vadd.f32 %v203, %v336
    %v338 = vpop.f32.mrb[0].mxu0
    %v339 = vadd.f32 %v205, %v338
    %340 = vmatprep.mubr.f32.mxu0 0.0
    %341 = vmatmul.mubr.f32.gmra.mrb[0].mxu0 %v88
    %v342 = vpop.f32.mrb[0].mxu0
    %v343 = vadd.f32 %v209, %v342
    %v344 = vpop.f32.mrb[0].mxu0
    %v345 = vadd.f32 %v211, %v344
    %346 = vmatprep.mubr.f32.mxu0 0.0
    %347 = vmatmul.mubr.f32.gmra.mrb[0].mxu0 %v91
    %v348 = vpop.f32.mrb[0].mxu0
    %v349 = vadd.f32 %v215, %v348
    %v350 = vpop.f32.mrb[0].mxu0
    %v351 = vadd.f32 %v217, %v350
    %352 = vmatprep.mubr.f32.mxu0 0.0
    %353 = vmatmul.mubr.f32.gmra.mrb[0].mxu0 %v94
    %v354 = vpop.f32.mrb[0].mxu0
    %v355 = vadd.f32 %v221, %v354
    %v356 = vpop.f32.mrb[0].mxu0
    %v357 = vadd.f32 %v223, %v356
    %358 = vmatprep.mubr.f32.mxu0 0.0
    %359 = vmatmul.mubr.f32.gmra.mrb[0].mxu0 %v97
    %v360 = vpop.f32.mrb[0].mxu0
    %v361 = vadd.f32 %v227, %v360
    %v362 = vpop.f32.mrb[0].mxu0
    %v363 = vadd.f32 %v229, %v362
    %364 = vmatprep.mubr.f32.mxu0 0.0
    %365 = vmatmul.mubr.f32.gmra.mrb[0].mxu0 %v100
    %v366 = vpop.f32.mrb[0].mxu0
    %v367 = vadd.f32 %v233, %v366
    %v368 = vpop.f32.mrb[0].mxu0
    %v369 = vadd.f32 %v235, %v368
    %370 = vdwg.mxu0
    %s371 = scalar_lea.vmem %s1, 352
    %v372 = vld [vmem:[%s371] sm:$0xff]
    %v373 = vld [vmem:[%s371 + $0x8] sm:$0xff]
    %v374 = vld [vmem:[%s371 + $0x10] sm:$0xff]
    %v375 = vld [vmem:[%s371 + $0x18] sm:$0xff]
    %v376 = vld [vmem:[%s371 + $0x20] sm:$0xff]
    %v377 = vld [vmem:[%s371 + $0x28] sm:$0xff]
    %v378 = vld [vmem:[%s371 + $0x30] sm:$0xff]
    %v379 = vld [vmem:[%s371 + $0x38] sm:$0xff]
    %v380 = vld [vmem:[%s371 + $0x40] sm:$0xff]
    %v381 = vld [vmem:[%s371 + $0x48] sm:$0xff]
    %v382 = vld [vmem:[%s371 + $0x50] sm:$0xff]
    %v383 = vld [vmem:[%s371 + $0x58] sm:$0xff]
    %v384 = vld [vmem:[%s371 + $0x60] sm:$0xff]
    %v385 = vld [vmem:[%s371 + $0x68] sm:$0xff]
    %v386 = vld [vmem:[%s371 + $0x70] sm:$0xff]
    %v387 = vld [vmem:[%s371 + $0x78] sm:$0xff]
    %v388 = vld [vmem:[%s371 + $0x80] sm:$0xff]
    %v389 = vld [vmem:[%s371 + $0x88] sm:$0xff]
    %v390 = vld [vmem:[%s371 + $0x90] sm:$0xff]
    %v391 = vld [vmem:[%s371 + $0x98] sm:$0xff]
    %v392 = vld [vmem:[%s371 + $0xa0] sm:$0xf]
    %v393 = vld [vmem:[%s371 + $0xa8] sm:$0xf]
    %v395 = vsel %vm74, %v26, 0
    %v398 = vsel %vm105, %v392, 0
    %v401 = vsel %vm105, %v393, 0
    %403 = vmatprep.subr.mxu0 %v373
    %404 = vmatpush1.msra.mxu0 %v372
    %405 = vmatprep.subr.mxu0 %v375
    %406 = vmatpush1.msra.mxu0 %v374
    %407 = vmatprep.subr.mxu0 %v377
    %408 = vmatpush1.msra.mxu0 %v376
    %409 = vmatprep.subr.mxu0 %v379
    %410 = vmatpush1.msra.mxu0 %v378
    %411 = vmatprep.subr.mxu0 %v381
    %412 = vmatpush1.msra.mxu0 %v380
    %413 = vmatprep.subr.mxu0 %v383
    %414 = vmatpush1.msra.mxu0 %v382
    %415 = vmatprep.subr.mxu0 %v385
    %416 = vmatpush1.msra.mxu0 %v384
    %417 = vmatprep.subr.mxu0 %v387
    %418 = vmatpush1.msra.mxu0 %v386
    %419 = vmatprep.subr.mxu0 %v389
    %420 = vmatpush1.msra.mxu0 %v388
    %421 = vmatprep.subr.mxu0 %v391
    %422 = vmatpush1.msra.mxu0 %v390
    %423 = vmatprep.subr.mxu0 %v401
    %424 = vmatpush1.msra.mxu0 %v398
    %425 = vmatprep.subr.mxu0 0.0
    %426 = vmatpush1.msra.mxu0 0.0
    %427 = vmatprep.subr.mxu0 0.0
    %428 = vmatpush1.msra.mxu0 0.0
    %429 = vmatprep.subr.mxu0 0.0
    %430 = vmatpush1.msra.mxu0 0.0
    %431 = vmatprep.subr.mxu0 0.0
    %432 = vmatpush1.msra.mxu0 0.0
    %433 = vmatprep.subr.mxu0 0.0
    %434 = vmatpush1.msra.mxu0 0.0
    %435 = vmatprep.subr.mxu0 0.0
    %436 = vmatpush1.msra.mxu0 0.0
    %437 = vmatprep.subr.mxu0 0.0
    %438 = vmatpush1.msra.mxu0 0.0
    %439 = vmatprep.subr.mxu0 0.0
    %440 = vmatpush1.msra.mxu0 0.0
    %441 = vmatprep.subr.mxu0 0.0
    %442 = vmatpush1.msra.mxu0 0.0
    %443 = vmatprep.subr.mxu0 0.0
    %444 = vmatpush1.msra.mxu0 0.0
    %445 = vmatprep.subr.mxu0 0.0
    %446 = vmatpush1.msra.mxu0 0.0
    %447 = vmatprep.subr.mxu0 0.0
    %448 = vmatpush1.msra.mxu0 0.0
    %449 = vmatprep.subr.mxu0 0.0
    %450 = vmatpush1.msra.mxu0 0.0
    %451 = vmatprep.subr.mxu0 0.0
    %452 = vmatpush1.msra.mxu0 0.0
    %453 = vmatprep.subr.mxu0 0.0
    %454 = vmatpush1.msra.mxu0 0.0
    %455 = vmatprep.subr.mxu0 0.0
    %456 = vmatpush1.msra.mxu0 0.0
    %457 = vmatprep.subr.mxu0 0.0
    %458 = vmatpush1.msra.mxu0 0.0
    %459 = vmatprep.subr.mxu0 0.0
    %460 = vmatpush1.msra.mxu0 0.0
    %461 = vmatprep.subr.mxu0 0.0
    %462 = vmatpush1.msra.mxu0 0.0
    %463 = vmatprep.subr.mxu0 0.0
    %464 = vmatpush1.msra.mxu0 0.0
    %465 = vmatprep.subr.mxu0 0.0
    %466 = vmatpush1.msra.mxu0 0.0
    %467 = vmatprep.mubr.f32.mxu0 0.0
    %468 = vmatmul.mubr.f32.gmra.mrb[0].mxu0 %v79
    %v469 = vpop.f32.mrb[0].mxu0
    %v470 = vadd.f32 0.0, %v469
    %v471 = vpop.f32.mrb[0].mxu0
    %v472 = vadd.f32 0.0, %v471
    %473 = vmatprep.mubr.f32.mxu0 0.0
    %474 = vmatmul.mubr.f32.gmra.mrb[0].mxu0 %v82
    %v475 = vpop.f32.mrb[0].mxu0
    %v476 = vadd.f32 0.0, %v475
    %v477 = vpop.f32.mrb[0].mxu0
    %v478 = vadd.f32 0.0, %v477
    %479 = vmatprep.mubr.f32.mxu0 0.0
    %480 = vmatmul.mubr.f32.gmra.mrb[0].mxu0 %v85
    %v481 = vpop.f32.mrb[0].mxu0
    %v482 = vadd.f32 0.0, %v481
    %v483 = vpop.f32.mrb[0].mxu0
    %v484 = vadd.f32 0.0, %v483
    %485 = vmatprep.mubr.f32.mxu0 0.0
    %486 = vmatmul.mubr.f32.gmra.mrb[0].mxu0 %v88
    %v487 = vpop.f32.mrb[0].mxu0
    %v488 = vadd.f32 0.0, %v487
    %v489 = vpop.f32.mrb[0].mxu0
    %v490 = vadd.f32 0.0, %v489
    %491 = vmatprep.mubr.f32.mxu0 0.0
    %492 = vmatmul.mubr.f32.gmra.mrb[0].mxu0 %v91
    %v493 = vpop.f32.mrb[0].mxu0
    %v494 = vadd.f32 0.0, %v493
    %v495 = vpop.f32.mrb[0].mxu0
    %v496 = vadd.f32 0.0, %v495
    %497 = vmatprep.mubr.f32.mxu0 0.0
    %498 = vmatmul.mubr.f32.gmra.mrb[0].mxu0 %v94
    %v499 = vpop.f32.mrb[0].mxu0
    %v500 = vadd.f32 0.0, %v499
    %v501 = vpop.f32.mrb[0].mxu0
    %v502 = vadd.f32 0.0, %v501
    %503 = vmatprep.mubr.f32.mxu0 0.0
    %504 = vmatmul.mubr.f32.gmra.mrb[0].mxu0 %v97
    %v505 = vpop.f32.mrb[0].mxu0
    %v506 = vadd.f32 0.0, %v505
    %v507 = vpop.f32.mrb[0].mxu0
    %v508 = vadd.f32 0.0, %v507
    %509 = vmatprep.mubr.f32.mxu0 0.0
    %510 = vmatmul.mubr.f32.gmra.mrb[0].mxu0 %v100
    %v511 = vpop.f32.mrb[0].mxu0
    %v512 = vadd.f32 0.0, %v511
    %v513 = vpop.f32.mrb[0].mxu0
    %v514 = vadd.f32 0.0, %v513
    %515 = vmatprep.mubr.f32.mxu0 0.0
    %516 = vmatmul.mubr.f32.gmra.mrb[0].mxu0 %v103
    %v517 = vpop.f32.mrb[0].mxu0
    %v518 = vadd.f32 0.0, %v517
    %v519 = vpop.f32.mrb[0].mxu0
    %v520 = vadd.f32 0.0, %v519
    %521 = vmatprep.mubr.f32.mxu0 0.0
    %522 = vmatmul.mubr.f32.gmra.mrb[0].mxu0 %v395
    %v523 = vpop.f32.mrb[0].mxu0
    %v524 = vadd.f32 0.0, %v523
    %v525 = vpop.f32.mrb[0].mxu0
    %v526 = vadd.f32 0.0, %v525
    %527 = vdwg.mxu0
    %v528 = vadd.f32 %v313, %v470
    %v529 = vadd.f32 %v315, %v472
    %v530 = vadd.f32 %v319, %v476
    %v531 = vadd.f32 %v321, %v478
    %v532 = vadd.f32 %v325, %v482
    %v533 = vadd.f32 %v327, %v484
    %v534 = vadd.f32 %v331, %v488
    %v535 = vadd.f32 %v333, %v490
    %v536 = vadd.f32 %v337, %v494
    %v537 = vadd.f32 %v339, %v496
    %v538 = vadd.f32 %v343, %v500
    %v539 = vadd.f32 %v345, %v502
    %v540 = vadd.f32 %v349, %v506
    %v541 = vadd.f32 %v351, %v508
    %v542 = vadd.f32 %v355, %v512
    %v543 = vadd.f32 %v357, %v514
    %v544 = vadd.f32 %v361, %v518
    %v545 = vadd.f32 %v363, %v520
    %v546 = vadd.f32 %v367, %v524
    %v547 = vadd.f32 %v369, %v526
    %s548 = scalar_lea.vmem %s1, 528
    %v549 = vld [vmem:[%s548] sm:$0xff]
    %v550 = vld [vmem:[%s548 + $0x8] sm:$0xff]
    %v551 = vld [vmem:[%s548 + $0x10] sm:$0xff]
    %v552 = vld [vmem:[%s548 + $0x18] sm:$0xff]
    %v553 = vld [vmem:[%s548 + $0x20] sm:$0xff]
    %v554 = vld [vmem:[%s548 + $0x28] sm:$0xff]
    %v555 = vld [vmem:[%s548 + $0x30] sm:$0xff]
    %v556 = vld [vmem:[%s548 + $0x38] sm:$0xff]
    %v557 = vld [vmem:[%s548 + $0x40] sm:$0xff]
    %v558 = vld [vmem:[%s548 + $0x48] sm:$0xff]
    %v559 = vld [vmem:[%s548 + $0x50] sm:$0xff]
    %v560 = vld [vmem:[%s548 + $0x58] sm:$0xff]
    %v561 = vld [vmem:[%s548 + $0x60] sm:$0xff]
    %v562 = vld [vmem:[%s548 + $0x68] sm:$0xff]
    %v563 = vld [vmem:[%s548 + $0x70] sm:$0xff]
    %v564 = vld [vmem:[%s548 + $0x78] sm:$0xff]
    %v565 = vld [vmem:[%s548 + $0x80] sm:$0xff]
    %v566 = vld [vmem:[%s548 + $0x88] sm:$0xff]
    %v567 = vld [vmem:[%s548 + $0x90] sm:$0xff]
    %v568 = vld [vmem:[%s548 + $0x98] sm:$0xff]
    %v569 = vld [vmem:[%s548 + $0xa0] sm:$0xf]
    %v570 = vld [vmem:[%s548 + $0xa8] sm:$0xf]
    %v572 = vsel %vm74, %v27, 0
    %v575 = vsel %vm105, %v569, 0
    %v578 = vsel %vm105, %v570, 0
    %580 = vmatprep.subr.mxu0 %v550
    %581 = vmatpush1.msra.mxu0 %v549
    %582 = vmatprep.subr.mxu0 %v552
    %583 = vmatpush1.msra.mxu0 %v551
    %584 = vmatprep.subr.mxu0 %v554
    %585 = vmatpush1.msra.mxu0 %v553
    %586 = vmatprep.subr.mxu0 %v556
    %587 = vmatpush1.msra.mxu0 %v555
    %588 = vmatprep.subr.mxu0 %v558
    %589 = vmatpush1.msra.mxu0 %v557
    %590 = vmatprep.subr.mxu0 %v560
    %591 = vmatpush1.msra.mxu0 %v559
    %592 = vmatprep.subr.mxu0 %v562
    %593 = vmatpush1.msra.mxu0 %v561
    %594 = vmatprep.subr.mxu0 %v564
    %595 = vmatpush1.msra.mxu0 %v563
    %596 = vmatprep.subr.mxu0 %v566
    %597 = vmatpush1.msra.mxu0 %v565
    %598 = vmatprep.subr.mxu0 %v568
    %599 = vmatpush1.msra.mxu0 %v567
    %600 = vmatprep.subr.mxu0 %v578
    %601 = vmatpush1.msra.mxu0 %v575
    %602 = vmatprep.subr.mxu0 0.0
    %603 = vmatpush1.msra.mxu0 0.0
    %604 = vmatprep.subr.mxu0 0.0
    %605 = vmatpush1.msra.mxu0 0.0
    %606 = vmatprep.subr.mxu0 0.0
    %607 = vmatpush1.msra.mxu0 0.0
    %608 = vmatprep.subr.mxu0 0.0
    %609 = vmatpush1.msra.mxu0 0.0
    %610 = vmatprep.subr.mxu0 0.0
    %611 = vmatpush1.msra.mxu0 0.0
    %612 = vmatprep.subr.mxu0 0.0
    %613 = vmatpush1.msra.mxu0 0.0
    %614 = vmatprep.subr.mxu0 0.0
    %615 = vmatpush1.msra.mxu0 0.0
    %616 = vmatprep.subr.mxu0 0.0
    %617 = vmatpush1.msra.mxu0 0.0
    %618 = vmatprep.subr.mxu0 0.0
    %619 = vmatpush1.msra.mxu0 0.0
    %620 = vmatprep.subr.mxu0 0.0
    %621 = vmatpush1.msra.mxu0 0.0
    %622 = vmatprep.subr.mxu0 0.0
    %623 = vmatpush1.msra.mxu0 0.0
    %624 = vmatprep.subr.mxu0 0.0
    %625 = vmatpush1.msra.mxu0 0.0
    %626 = vmatprep.subr.mxu0 0.0
    %627 = vmatpush1.msra.mxu0 0.0
    %628 = vmatprep.subr.mxu0 0.0
    %629 = vmatpush1.msra.mxu0 0.0
    %630 = vmatprep.subr.mxu0 0.0
    %631 = vmatpush1.msra.mxu0 0.0
    %632 = vmatprep.subr.mxu0 0.0
    %633 = vmatpush1.msra.mxu0 0.0
    %634 = vmatprep.subr.mxu0 0.0
    %635 = vmatpush1.msra.mxu0 0.0
    %636 = vmatprep.subr.mxu0 0.0
    %637 = vmatpush1.msra.mxu0 0.0
    %638 = vmatprep.subr.mxu0 0.0
    %639 = vmatpush1.msra.mxu0 0.0
    %640 = vmatprep.subr.mxu0 0.0
    %641 = vmatpush1.msra.mxu0 0.0
    %642 = vmatprep.subr.mxu0 0.0
    %643 = vmatpush1.msra.mxu0 0.0
    %644 = vmatprep.mubr.f32.mxu0 0.0
    %645 = vmatmul.mubr.f32.gmra.mrb[0].mxu0 %v82
    %v646 = vpop.f32.mrb[0].mxu0
    %v647 = vadd.f32 0.0, %v646
    %v648 = vpop.f32.mrb[0].mxu0
    %v649 = vadd.f32 0.0, %v648
    %650 = vmatprep.mubr.f32.mxu0 0.0
    %651 = vmatmul.mubr.f32.gmra.mrb[0].mxu0 %v85
    %v652 = vpop.f32.mrb[0].mxu0
    %v653 = vadd.f32 0.0, %v652
    %v654 = vpop.f32.mrb[0].mxu0
    %v655 = vadd.f32 0.0, %v654
    %656 = vmatprep.mubr.f32.mxu0 0.0
    %657 = vmatmul.mubr.f32.gmra.mrb[0].mxu0 %v88
    %v658 = vpop.f32.mrb[0].mxu0
    %v659 = vadd.f32 0.0, %v658
    %v660 = vpop.f32.mrb[0].mxu0
    %v661 = vadd.f32 0.0, %v660
    %662 = vmatprep.mubr.f32.mxu0 0.0
    %663 = vmatmul.mubr.f32.gmra.mrb[0].mxu0 %v91
    %v664 = vpop.f32.mrb[0].mxu0
    %v665 = vadd.f32 0.0, %v664
    %v666 = vpop.f32.mrb[0].mxu0
    %v667 = vadd.f32 0.0, %v666
    %668 = vmatprep.mubr.f32.mxu0 0.0
    %669 = vmatmul.mubr.f32.gmra.mrb[0].mxu0 %v94
    %v670 = vpop.f32.mrb[0].mxu0
    %v671 = vadd.f32 0.0, %v670
    %v672 = vpop.f32.mrb[0].mxu0
    %v673 = vadd.f32 0.0, %v672
    %674 = vmatprep.mubr.f32.mxu0 0.0
    %675 = vmatmul.mubr.f32.gmra.mrb[0].mxu0 %v97
    %v676 = vpop.f32.mrb[0].mxu0
    %v677 = vadd.f32 0.0, %v676
    %v678 = vpop.f32.mrb[0].mxu0
    %v679 = vadd.f32 0.0, %v678
    %680 = vmatprep.mubr.f32.mxu0 0.0
    %681 = vmatmul.mubr.f32.gmra.mrb[0].mxu0 %v100
    %v682 = vpop.f32.mrb[0].mxu0
    %v683 = vadd.f32 0.0, %v682
    %v684 = vpop.f32.mrb[0].mxu0
    %v685 = vadd.f32 0.0, %v684
    %686 = vmatprep.mubr.f32.mxu0 0.0
    %687 = vmatmul.mubr.f32.gmra.mrb[0].mxu0 %v103
    %v688 = vpop.f32.mrb[0].mxu0
    %v689 = vadd.f32 0.0, %v688
    %v690 = vpop.f32.mrb[0].mxu0
    %v691 = vadd.f32 0.0, %v690
    %692 = vmatprep.mubr.f32.mxu0 0.0
    %693 = vmatmul.mubr.f32.gmra.mrb[0].mxu0 %v395
    %v694 = vpop.f32.mrb[0].mxu0
    %v695 = vadd.f32 0.0, %v694
    %v696 = vpop.f32.mrb[0].mxu0
    %v697 = vadd.f32 0.0, %v696
    %698 = vmatprep.mubr.f32.mxu0 0.0
    %699 = vmatmul.mubr.f32.gmra.mrb[0].mxu0 %v572
    %v700 = vpop.f32.mrb[0].mxu0
    %v701 = vadd.f32 0.0, %v700
    %v702 = vpop.f32.mrb[0].mxu0
    %v703 = vadd.f32 0.0, %v702
    %704 = vdwg.mxu0
    %v705 = vadd.f32 %v528, %v647
    %v706 = vadd.f32 %v529, %v649
    %v707 = vadd.f32 %v530, %v653
    %v708 = vadd.f32 %v531, %v655
    %v709 = vadd.f32 %v532, %v659
    %v710 = vadd.f32 %v533, %v661
    %v711 = vadd.f32 %v534, %v665
    %v712 = vadd.f32 %v535, %v667
    %v713 = vadd.f32 %v536, %v671
    %v714 = vadd.f32 %v537, %v673
    %v715 = vadd.f32 %v538, %v677
    %v716 = vadd.f32 %v539, %v679
    %v717 = vadd.f32 %v540, %v683
    %v718 = vadd.f32 %v541, %v685
    %v719 = vadd.f32 %v542, %v689
    %v720 = vadd.f32 %v543, %v691
    %v721 = vadd.f32 %v544, %v695
    %v722 = vadd.f32 %v545, %v697
    %v723 = vadd.f32 %v546, %v701
    %v724 = vadd.f32 %v547, %v703
    %s725 = scalar_lea.vmem %s1, 704
    %v726 = vld [vmem:[%s725] sm:$0xff]
    %v727 = vld [vmem:[%s725 + $0x8] sm:$0xff]
    %v728 = vld [vmem:[%s725 + $0x10] sm:$0xff]
    %v729 = vld [vmem:[%s725 + $0x18] sm:$0xff]
    %v730 = vld [vmem:[%s725 + $0x20] sm:$0xff]
    %v731 = vld [vmem:[%s725 + $0x28] sm:$0xff]
    %v732 = vld [vmem:[%s725 + $0x30] sm:$0xff]
    %v733 = vld [vmem:[%s725 + $0x38] sm:$0xff]
    %v734 = vld [vmem:[%s725 + $0x40] sm:$0xff]
    %v735 = vld [vmem:[%s725 + $0x48] sm:$0xff]
    %v736 = vld [vmem:[%s725 + $0x50] sm:$0xff]
    %v737 = vld [vmem:[%s725 + $0x58] sm:$0xff]
    %v738 = vld [vmem:[%s725 + $0x60] sm:$0xff]
    %v739 = vld [vmem:[%s725 + $0x68] sm:$0xff]
    %v740 = vld [vmem:[%s725 + $0x70] sm:$0xff]
    %v741 = vld [vmem:[%s725 + $0x78] sm:$0xff]
    %v742 = vld [vmem:[%s725 + $0x80] sm:$0xff]
    %v743 = vld [vmem:[%s725 + $0x88] sm:$0xff]
    %v744 = vld [vmem:[%s725 + $0x90] sm:$0xff]
    %v745 = vld [vmem:[%s725 + $0x98] sm:$0xff]
    %v746 = vld [vmem:[%s725 + $0xa0] sm:$0xf]
    %v747 = vld [vmem:[%s725 + $0xa8] sm:$0xf]
    %v749 = vsel %vm74, %v28, 0
    %v752 = vsel %vm105, %v746, 0
    %v755 = vsel %vm105, %v747, 0
    %757 = vmatprep.subr.mxu0 %v727
    %758 = vmatpush1.msra.mxu0 %v726
    %759 = vmatprep.subr.mxu0 %v729
    %760 = vmatpush1.msra.mxu0 %v728
    %761 = vmatprep.subr.mxu0 %v731
    %762 = vmatpush1.msra.mxu0 %v730
    %763 = vmatprep.subr.mxu0 %v733
    %764 = vmatpush1.msra.mxu0 %v732
    %765 = vmatprep.subr.mxu0 %v735
    %766 = vmatpush1.msra.mxu0 %v734
    %767 = vmatprep.subr.mxu0 %v737
    %768 = vmatpush1.msra.mxu0 %v736
    %769 = vmatprep.subr.mxu0 %v739
    %770 = vmatpush1.msra.mxu0 %v738
    %771 = vmatprep.subr.mxu0 %v741
    %772 = vmatpush1.msra.mxu0 %v740
    %773 = vmatprep.subr.mxu0 %v743
    %774 = vmatpush1.msra.mxu0 %v742
    %775 = vmatprep.subr.mxu0 %v745
    %776 = vmatpush1.msra.mxu0 %v744
    %777 = vmatprep.subr.mxu0 %v755
    %778 = vmatpush1.msra.mxu0 %v752
    %779 = vmatprep.subr.mxu0 0.0
    %780 = vmatpush1.msra.mxu0 0.0
    %781 = vmatprep.subr.mxu0 0.0
    %782 = vmatpush1.msra.mxu0 0.0
    %783 = vmatprep.subr.mxu0 0.0
    %784 = vmatpush1.msra.mxu0 0.0
    %785 = vmatprep.subr.mxu0 0.0
    %786 = vmatpush1.msra.mxu0 0.0
    %787 = vmatprep.subr.mxu0 0.0
    %788 = vmatpush1.msra.mxu0 0.0
    %789 = vmatprep.subr.mxu0 0.0
    %790 = vmatpush1.msra.mxu0 0.0
    %791 = vmatprep.subr.mxu0 0.0
    %792 = vmatpush1.msra.mxu0 0.0
    %793 = vmatprep.subr.mxu0 0.0
    %794 = vmatpush1.msra.mxu0 0.0
    %795 = vmatprep.subr.mxu0 0.0
    %796 = vmatpush1.msra.mxu0 0.0
    %797 = vmatprep.subr.mxu0 0.0
    %798 = vmatpush1.msra.mxu0 0.0
    %799 = vmatprep.subr.mxu0 0.0
    %800 = vmatpush1.msra.mxu0 0.0
    %801 = vmatprep.subr.mxu0 0.0
    %802 = vmatpush1.msra.mxu0 0.0
    %803 = vmatprep.subr.mxu0 0.0
    %804 = vmatpush1.msra.mxu0 0.0
    %805 = vmatprep.subr.mxu0 0.0
    %806 = vmatpush1.msra.mxu0 0.0
    %807 = vmatprep.subr.mxu0 0.0
    %808 = vmatpush1.msra.mxu0 0.0
    %809 = vmatprep.subr.mxu0 0.0
    %810 = vmatpush1.msra.mxu0 0.0
    %811 = vmatprep.subr.mxu0 0.0
    %812 = vmatpush1.msra.mxu0 0.0
    %813 = vmatprep.subr.mxu0 0.0
    %814 = vmatpush1.msra.mxu0 0.0
    %815 = vmatprep.subr.mxu0 0.0
    %816 = vmatpush1.msra.mxu0 0.0
    %817 = vmatprep.subr.mxu0 0.0
    %818 = vmatpush1.msra.mxu0 0.0
    %819 = vmatprep.subr.mxu0 0.0
    %820 = vmatpush1.msra.mxu0 0.0
    %821 = vmatprep.mubr.f32.mxu0 0.0
    %822 = vmatmul.mubr.f32.gmra.mrb[0].mxu0 %v85
    %v823 = vpop.f32.mrb[0].mxu0
    %v824 = vadd.f32 0.0, %v823
    %v825 = vpop.f32.mrb[0].mxu0
    %v826 = vadd.f32 0.0, %v825
    %827 = vmatprep.mubr.f32.mxu0 0.0
    %828 = vmatmul.mubr.f32.gmra.mrb[0].mxu0 %v88
    %v829 = vpop.f32.mrb[0].mxu0
    %v830 = vadd.f32 0.0, %v829
    %v831 = vpop.f32.mrb[0].mxu0
    %v832 = vadd.f32 0.0, %v831
    %833 = vmatprep.mubr.f32.mxu0 0.0
    %834 = vmatmul.mubr.f32.gmra.mrb[0].mxu0 %v91
    %v835 = vpop.f32.mrb[0].mxu0
    %v836 = vadd.f32 0.0, %v835
    %v837 = vpop.f32.mrb[0].mxu0
    %v838 = vadd.f32 0.0, %v837
    %839 = vmatprep.mubr.f32.mxu0 0.0
    %840 = vmatmul.mubr.f32.gmra.mrb[0].mxu0 %v94
    %v841 = vpop.f32.mrb[0].mxu0
    %v842 = vadd.f32 0.0, %v841
    %v843 = vpop.f32.mrb[0].mxu0
    %v844 = vadd.f32 0.0, %v843
    %845 = vmatprep.mubr.f32.mxu0 0.0
    %846 = vmatmul.mubr.f32.gmra.mrb[0].mxu0 %v97
    %v847 = vpop.f32.mrb[0].mxu0
    %v848 = vadd.f32 0.0, %v847
    %v849 = vpop.f32.mrb[0].mxu0
    %v850 = vadd.f32 0.0, %v849
    %851 = vmatprep.mubr.f32.mxu0 0.0
    %852 = vmatmul.mubr.f32.gmra.mrb[0].mxu0 %v100
    %v853 = vpop.f32.mrb[0].mxu0
    %v854 = vadd.f32 0.0, %v853
    %v855 = vpop.f32.mrb[0].mxu0
    %v856 = vadd.f32 0.0, %v855
    %857 = vmatprep.mubr.f32.mxu0 0.0
    %858 = vmatmul.mubr.f32.gmra.mrb[0].mxu0 %v103
    %v859 = vpop.f32.mrb[0].mxu0
    %v860 = vadd.f32 0.0, %v859
    %v861 = vpop.f32.mrb[0].mxu0
    %v862 = vadd.f32 0.0, %v861
    %863 = vmatprep.mubr.f32.mxu0 0.0
    %864 = vmatmul.mubr.f32.gmra.mrb[0].mxu0 %v395
    %v865 = vpop.f32.mrb[0].mxu0
    %v866 = vadd.f32 0.0, %v865
    %v867 = vpop.f32.mrb[0].mxu0
    %v868 = vadd.f32 0.0, %v867
    %869 = vmatprep.mubr.f32.mxu0 0.0
    %870 = vmatmul.mubr.f32.gmra.mrb[0].mxu0 %v572
    %v871 = vpop.f32.mrb[0].mxu0
    %v872 = vadd.f32 0.0, %v871
    %v873 = vpop.f32.mrb[0].mxu0
    %v874 = vadd.f32 0.0, %v873
    %875 = vmatprep.mubr.f32.mxu0 0.0
    %876 = vmatmul.mubr.f32.gmra.mrb[0].mxu0 %v749
    %v877 = vpop.f32.mrb[0].mxu0
    %v878 = vadd.f32 0.0, %v877
    %v879 = vpop.f32.mrb[0].mxu0
    %v880 = vadd.f32 0.0, %v879
    %881 = vdwg.mxu0
    %v882 = vadd.f32 %v705, %v824
    %v883 = vadd.f32 %v706, %v826
    %v884 = vadd.f32 %v707, %v830
    %v885 = vadd.f32 %v708, %v832
    %v886 = vadd.f32 %v709, %v836
    %v887 = vadd.f32 %v710, %v838
    %v888 = vadd.f32 %v711, %v842
    %v889 = vadd.f32 %v712, %v844
    %v890 = vadd.f32 %v713, %v848
    %v891 = vadd.f32 %v714, %v850
    %v892 = vadd.f32 %v715, %v854
    %v893 = vadd.f32 %v716, %v856
    %v894 = vadd.f32 %v717, %v860
    %v895 = vadd.f32 %v718, %v862
    %v896 = vadd.f32 %v719, %v866
    %v897 = vadd.f32 %v720, %v868
    %v898 = vadd.f32 %v721, %v872
    %v899 = vadd.f32 %v722, %v874
    %v900 = vadd.f32 %v723, %v878
    %v901 = vadd.f32 %v724, %v880
    %922 = vrot.lane.b32.xlu0 %v882, 48
    %v923 = vpop.permute.xlu0 %922
    %924 = vrot.lane.b32.xlu0 %v883, 48
    %v925 = vpop.permute.xlu0 %924
    %926 = vrot.lane.b32.xlu0 %v884, 48
    %v927 = vpop.permute.xlu0 %926
    %928 = vrot.lane.b32.xlu0 %v885, 48
    %v929 = vpop.permute.xlu0 %928
    %930 = vrot.lane.b32.xlu0 %v886, 48
    %v931 = vpop.permute.xlu0 %930
    %932 = vrot.lane.b32.xlu0 %v887, 48
    %v933 = vpop.permute.xlu0 %932
    %934 = vrot.lane.b32.xlu0 %v888, 48
    %v935 = vpop.permute.xlu0 %934
    %936 = vrot.lane.b32.xlu0 %v889, 48
    %v937 = vpop.permute.xlu0 %936
    %938 = vrot.lane.b32.xlu0 %v890, 48
    %v939 = vpop.permute.xlu0 %938
    %940 = vrot.lane.b32.xlu0 %v891, 48
    %v941 = vpop.permute.xlu0 %940
    %942 = vrot.lane.b32.xlu0 %v892, 48
    %v943 = vpop.permute.xlu0 %942
    %944 = vrot.lane.b32.xlu0 %v893, 48
    %v945 = vpop.permute.xlu0 %944
    %946 = vrot.lane.b32.xlu0 %v894, 48
    %v947 = vpop.permute.xlu0 %946
    %948 = vrot.lane.b32.xlu0 %v895, 48
    %v949 = vpop.permute.xlu0 %948
    %950 = vrot.lane.b32.xlu0 %v896, 48
    %v951 = vpop.permute.xlu0 %950
    %952 = vrot.lane.b32.xlu0 %v897, 48
    %v953 = vpop.permute.xlu0 %952
    %954 = vrot.lane.b32.xlu0 %v898, 48
    %v955 = vpop.permute.xlu0 %954
    %956 = vrot.lane.b32.xlu0 %v899, 48
    %v957 = vpop.permute.xlu0 %956
    %958 = vrot.lane.b32.xlu0 %v900, 48
    %v959 = vpop.permute.xlu0 %958
    %960 = vrot.lane.b32.xlu0 %v901, 48
    %v961 = vpop.permute.xlu0 %960
    %vm962 = vcmask 392192
    %v963 = vsel %vm962, %v923, %v925
    %v964 = vsel %vm962, %v927, %v929
    %v965 = vsel %vm962, %v931, %v933
    %v966 = vsel %vm962, %v935, %v937
    %v967 = vsel %vm962, %v939, %v941
    %v968 = vsel %vm962, %v943, %v945
    %v969 = vsel %vm962, %v947, %v949
    %v970 = vsel %vm962, %v951, %v953
    %v971 = vsel %vm962, %v955, %v957
    %v972 = vsel %vm962, %v959, %v961
    %v983 = vmax.f32 %v882, %v963
    %v984 = vmax.f32 %v884, %v964
    %v985 = vmax.f32 %v886, %v965
    %v986 = vmax.f32 %v888, %v966
    %v987 = vmax.f32 %v890, %v967
    %v988 = vmax.f32 %v892, %v968
    %v989 = vmax.f32 %v894, %v969
    %v990 = vmax.f32 %v896, %v970
    %v991 = vmax.f32 %v898, %v971
    %v992 = vmax.f32 %v900, %v972
    %v993 = vld [vmem:[%s2] sm:$0x1]
    %v994 = vmax.f32 %v983, %v984
    %v996 = vlaneseq
    %v997 = vshrl.u32 %v996, 7
    %v998 = vsub.s32 0, %v997
    %v999 = vrot.slane %v993, %v998
    %v1001 = vadd.f32 %v994, %v999
    %v1002 = vmax.f32 %v1001, 0.0
    %vm1003 = vcmask 654336
    %1004 = vst.msk [vmem:[#allocation2] sm:$0xff] %vm1003, %v1002
    %v1005 = vmax.f32 %v985, %v986
    %v1006 = vadd.f32 %v1005, %v999
    %v1007 = vmax.f32 %v1006, 0.0
    %s1008 = scalar_lea.vmem [#allocation2], 8
    %1009 = vst.msk [vmem:[%s1008] sm:$0xff] %vm1003, %v1007
    %v1010 = vmax.f32 %v987, %v988
    %v1011 = vadd.f32 %v1010, %v999
    %v1012 = vmax.f32 %v1011, 0.0
    %s1013 = scalar_lea.vmem [#allocation2], 16
    %1014 = vst.msk [vmem:[%s1013] sm:$0xff] %vm1003, %v1012
    %v1015 = vmax.f32 %v989, %v990
    %v1016 = vadd.f32 %v1015, %v999
    %v1017 = vmax.f32 %v1016, 0.0
    %s1018 = scalar_lea.vmem [#allocation2], 24
    %1019 = vst.msk [vmem:[%s1018] sm:$0xff] %vm1003, %v1017
    %v1020 = vmax.f32 %v991, %v992
    %v1021 = vadd.f32 %v1020, %v999
    %v1022 = vmax.f32 %v1021, 0.0
    %s1023 = scalar_lea.vmem [#allocation2], 32
    %1024 = vst.msk [vmem:[%s1023] sm:$0xff] %vm1003, %v1022
    // Predicated region
    $region14: #{tpu_custom_call.1} parent=1 // pred_check
      _
    $region15: #{tpu_custom_call.1} parent=1 // pred_check_branch
      %1026 = sbr.rel (0) target = $region17
    $region16: #{tpu_custom_call.1} parent=1 // pred_region
      %s1028 = ssub.s32 640, 640
      %1029 = vsyncadd [#allocation3], %s1028
      %s1030 = sshll.u32 [#allocation2], 4
      %s1031 = int_to_ptr.vmem [resolvable:$true] %s1030
      %1036 = dma.vmem_to_hbm [thread:$0]  %s1031, 640, %s3, [#allocation3], 128, 128, 8
    $region17: #{tpu_custom_call.1} parent=1 // pred_fallthru
      _
    // Predicated region
    $region18: #{tpu_custom_call.1} parent=1 // pred_check
      _
    $region19: #{tpu_custom_call.1} parent=1 // pred_check_branch
      %1038 = sbr.rel (0) target = $region21
    $region20: #{tpu_custom_call.1} parent=1 // pred_region
      %1039 = dma.done [#allocation3], 640
    $region21: #{tpu_custom_call.1} parent=1 // pred_fallthru
      _
    %1040 = vsyncpa [#allocation3], 1

</llo_original>
